<compile_context>
chip_gen: v6e
topology: v6e:2x2x1
jax: 0.10.0
libtpu: 0.0.40
codegen_flags: <defaults>
</compile_context>

<pallas_src>
import jax
import jax.numpy as jnp
from jax.experimental import pallas as pl
from jax.experimental.pallas import tpu as pltpu


# ---------------------------------------------------------------------------
# Small path: one full-extent VMEM block (one DMA in + one DMA out).
# ---------------------------------------------------------------------------
def _identity_kernel(x_ref, o_ref):
    o_ref[...] = x_ref[...]


# ---------------------------------------------------------------------------
# Large path: direct HBM -> HBM DMA, no VMEM staging, no shape constraints.
# ---------------------------------------------------------------------------
def _make_hbm_copy_kernel(chunks):
    """chunks: static tuple of (start, size) element ranges of the flat array."""

    def kernel(x_hbm, o_hbm, sems):
        copies = []
        for q, (start, size) in enumerate(chunks):
            cp = pltpu.make_async_copy(
                x_hbm.at[pl.ds(start, size)],
                o_hbm.at[pl.ds(start, size)],
                sems.at[q],
            )
            cp.start()
            copies.append(cp)
        for cp in copies:
            cp.wait()

    return kernel


def _hbm_copy(x_flat, n_chunks):
    n = x_flat.shape[0]
    n_chunks = max(1, min(int(n_chunks), n))
    base, rem = divmod(n, n_chunks)
    chunks, start = [], 0
    for q in range(n_chunks):
        size = base + (1 if q < rem else 0)
        chunks.append((start, size))
        start += size
    chunks = tuple(chunks)

    return pl.pallas_call(
        _make_hbm_copy_kernel(chunks),
        out_shape=jax.ShapeDtypeStruct((n,), x_flat.dtype),
        in_specs=[pl.BlockSpec(memory_space=pl.ANY)],
        out_specs=pl.BlockSpec(memory_space=pl.ANY),
        scratch_shapes=[pltpu.SemaphoreType.DMA((len(chunks),))],
    )(x_flat)


# ---------------------------------------------------------------------------
# Wrapper
# ---------------------------------------------------------------------------
def identity(x, donate=False, small_threshold_bytes=4 << 20, num_dma_chunks=None):
    """Pallas identity: returns an array equal to x (same shape & dtype).

    donate=True: nn.Identity + a donatable buffer is a true no-op, so we
    return x directly (zero HBM traffic).  Otherwise an explicit copy is made:
      * small arrays (< small_threshold_bytes): single full-extent VMEM block,
      * large arrays: chunked direct HBM->HBM DMA (no VMEM staging, works for
        any element count / shape).
    num_dma_chunks optionally overrides the number of parallel DMA streams in
    the HBM->HBM path (testing / tuning knob).
    """
    orig_shape = x.shape
    dtype = x.dtype
    n = x.size
    if n == 0 or donate:
        # Identity with a donated (or empty) buffer: nothing to move.
        return x

    itemsize = jnp.dtype(dtype).itemsize
    total_bytes = n * itemsize

    # ---------------- small: one full-array block in VMEM -------------------
    if total_bytes <= small_threshold_bytes:
        xk = x if x.ndim >= 2 else x.reshape(1, -1)
        # in + out reside in VMEM simultaneously; threshold 4 MiB => <= ~12 MiB
        # requested, safe on v5e/v6e/v7x alike.
        vmem_limit = int(min(96 << 20, 2 * total_bytes + (4 << 20)))
        out = pl.pallas_call(
            _identity_kernel,
            out_shape=jax.ShapeDtypeStruct(xk.shape, dtype),
            compiler_params=pltpu.CompilerParams(vmem_limit_bytes=vmem_limit),
        )(xk)
        return out.reshape(orig_shape)

    # ---------------- large: direct HBM -> HBM DMA --------------------------
    if num_dma_chunks is None:
        # ~8 MiB per DMA stream, at most 8 outstanding streams.
        num_dma_chunks = min(8, max(1, -(-total_bytes // (8 << 20))))
    out_flat = _hbm_copy(x.reshape(-1), num_dma_chunks)
    return out_flat.reshape(orig_shape)


# ---------------------------------------------------------------------------
# Self-test
# ---------------------------------------------------------------------------
if __name__ == "__main__":
    key0, key1, key2 = jax.random.split(jax.random.PRNGKey(0), 3)

    # 1) Small NCHW-shaped feature map -> single full-block VMEM copy path.
    x = jax.random.normal(key0, (2, 4, 16, 16), dtype=jnp.float32)
    y = jax.block_until_ready(identity(x))
    assert y.shape == x.shape
    assert y.dtype == x.dtype
    assert jnp.array_equal(y, x)

    # 2) Direct HBM->HBM DMA path (forced), odd element count (no padding
    #    needed) and a larger array split across multiple DMA streams.
    x_odd = jax.random.normal(key1, (3, 5, 7, 11), dtype=jnp.float32)
    y_odd = jax.block_until_ready(identity(x_odd, small_threshold_bytes=0))
    assert jnp.array_equal(y_odd, x_odd)

    x_big = jax.random.normal(key2, (40, 64, 64), dtype=jnp.float32)  # 640 KiB
    y_big = jax.block_until_ready(
        identity(x_big, small_threshold_bytes=0, num_dma_chunks=4))
    assert jnp.array_equal(y_big, x_big)

    # 3) Donation path: identity + donation is a true no-op (zero HBM traffic).
    y_don = identity(x, donate=True)
    assert y_don is x
    assert jnp.array_equal(y_don, x)

    print("KERNEL_OK")
</pallas_src>

<mosaic_0001>
module attributes {stable_mosaic.version = 11 : i64} {
  func.func @_identity_kernel(%arg0: memref<2x4x16x16xf32, #tpu.memory_space<vmem>>, %arg1: memref<2x4x16x16xf32, #tpu.memory_space<vmem>>) attributes {dimension_semantics = [], scalar_prefetch = 0 : i64, scratch_operands = 0 : i64, tpu.core_type = #tpu.core_type<tc>} {
    %c0 = arith.constant 0 : index
    %c0_0 = arith.constant 0 : index
    %c0_1 = arith.constant 0 : index
    %c0_2 = arith.constant 0 : index
    %0 = vector.load %arg0[%c0, %c0_0, %c0_1, %c0_2] : memref<2x4x16x16xf32, #tpu.memory_space<vmem>>, vector<2x4x16x16xf32>
    %c0_3 = arith.constant 0 : index
    %c0_4 = arith.constant 0 : index
    %c0_5 = arith.constant 0 : index
    %c0_6 = arith.constant 0 : index
    %1 = vector.load %arg1[%c0_3, %c0_4, %c0_5, %c0_6] : memref<2x4x16x16xf32, #tpu.memory_space<vmem>>, vector<2x4x16x16xf32>
    tpu.vector_store %arg1[%c0_3, %c0_4, %c0_5, %c0_6], %0 {strides = array<i32>} : memref<2x4x16x16xf32, #tpu.memory_space<vmem>>, vector<2x4x16x16xf32>,
    return
  }
}

</mosaic_0001>

<llo_original>
// kernel: tpu_custom_call.1
$region0: #{tpu_custom_call.1}
  #allocation0 [shape = 'u32[]', space=smem, size = 0x4, offset = 0x4, fixed_abs, tag = 'smem constant byte address 0x4 - core index']
  #allocation1 [shape = 'u32[144,128]{1,0:T(1,128)}', space=vmem, size = 0x12000, scoped, tag = 'internal scratch']
  %s0 = inlined_call_operand.hbm [shape: f32[2,4,16,16], index: 0, kind: input, shape index: {}]
  %s1 = inlined_call_operand.hbm [shape: f32[2,4,16,16], index: 1, kind: output, shape index: {}]
  %s2 = sld [smem:[#allocation0]]
  $region18: #{tpu_custom_call.1} parent=0
    _
  %s4 = ssub.s32 1, %s2
  %s5 = scalar_select 0, %s4, %s2
  $region1: #{tpu_custom_call.1} parent=0
    #allocation2 [shape = 'u8[65536]{0}', space=vmem, size = 0x10000, scoped, tag = 'input window, operand 0, single buffered']
    #allocation3 [shape = 's32[1]{0}', space=sflag, size = 0x4, scoped, tag = 'scoped memory for tpu_custom_call.1']
    #allocation4 [shape = 's32[1]{0}', space=sflag, size = 0x4, scoped, tag = 'scoped memory for tpu_custom_call.1']
    #allocation5 [shape = 'u8[65536]{0}', space=vmem, size = 0x10000, scoped, tag = 'output window, operand 0, single buffered']
    %6 = vsyncpa [#allocation3], 0
    %7 = vsyncpa [#allocation4], 0
    // Predicated region
    $region2: #{tpu_custom_call.1} parent=1 // pred_check
      _
    $region3: #{tpu_custom_call.1} parent=1 // pred_check_branch
      %9 = sbr.rel (0) target = $region5
    $region4: #{tpu_custom_call.1} parent=1 // pred_region
      %s11 = ssub.s32 2048, 2048
      %12 = vsyncadd [#allocation3], %s11
      %s13 = sshll.u32 [#allocation2], 4
      %s14 = int_to_ptr.vmem [resolvable:$true] %s13
      %19 = dma.hbm_to_vmem [thread:$0]  %s0, 2048, %s14, [#allocation3], 128, 128, 8
    $region5: #{tpu_custom_call.1} parent=1 // pred_fallthru
      _
    // Predicated region
    $region6: #{tpu_custom_call.1} parent=1 // pred_check
      _
    $region7: #{tpu_custom_call.1} parent=1 // pred_check_branch
      %21 = sbr.rel (0) target = $region9
    $region8: #{tpu_custom_call.1} parent=1 // pred_region
      %22 = dma.done [#allocation3], 2048
    $region9: #{tpu_custom_call.1} parent=1 // pred_fallthru
      _
    %v23 = vld [vmem:[#allocation2] sm:$0xff]
    %v24 = vld [vmem:[#allocation2 + $0x8] sm:$0xff]
    %v25 = vld [vmem:[#allocation2 + $0x10] sm:$0xff]
    %v26 = vld [vmem:[#allocation2 + $0x18] sm:$0xff]
    %v27 = vld [vmem:[#allocation2 + $0x20] sm:$0xff]
    %v28 = vld [vmem:[#allocation2 + $0x28] sm:$0xff]
    %v29 = vld [vmem:[#allocation2 + $0x30] sm:$0xff]
    %v30 = vld [vmem:[#allocation2 + $0x38] sm:$0xff]
    %v31 = vld [vmem:[#allocation2 + $0x40] sm:$0xff]
    %v32 = vld [vmem:[#allocation2 + $0x48] sm:$0xff]
    %v33 = vld [vmem:[#allocation2 + $0x50] sm:$0xff]
    %v34 = vld [vmem:[#allocation2 + $0x58] sm:$0xff]
    %v35 = vld [vmem:[#allocation2 + $0x60] sm:$0xff]
    %v36 = vld [vmem:[#allocation2 + $0x68] sm:$0xff]
    %v37 = vld [vmem:[#allocation2 + $0x70] sm:$0xff]
    %v38 = vld [vmem:[#allocation2 + $0x78] sm:$0xff]
    %vm39 = vcmask 130048
    %40 = vst.msk [vmem:[#allocation5] sm:$0xff] %vm39, %v23
    %41 = vst.msk [vmem:[#allocation5 + $0x8] sm:$0xff] %vm39, %v24
    %42 = vst.msk [vmem:[#allocation5 + $0x10] sm:$0xff] %vm39, %v25
    %43 = vst.msk [vmem:[#allocation5 + $0x18] sm:$0xff] %vm39, %v26
    %44 = vst.msk [vmem:[#allocation5 + $0x20] sm:$0xff] %vm39, %v27
    %45 = vst.msk [vmem:[#allocation5 + $0x28] sm:$0xff] %vm39, %v28
    %46 = vst.msk [vmem:[#allocation5 + $0x30] sm:$0xff] %vm39, %v29
    %47 = vst.msk [vmem:[#allocation5 + $0x38] sm:$0xff] %vm39, %v30
    %48 = vst.msk [vmem:[#allocation5 + $0x40] sm:$0xff] %vm39, %v31
    %49 = vst.msk [vmem:[#allocation5 + $0x48] sm:$0xff] %vm39, %v32
    %50 = vst.msk [vmem:[#allocation5 + $0x50] sm:$0xff] %vm39, %v33
    %51 = vst.msk [vmem:[#allocation5 + $0x58] sm:$0xff] %vm39, %v34
    %52 = vst.msk [vmem:[#allocation5 + $0x60] sm:$0xff] %vm39, %v35
    %53 = vst.msk [vmem:[#allocation5 + $0x68] sm:$0xff] %vm39, %v36
    %54 = vst.msk [vmem:[#allocation5 + $0x70] sm:$0xff] %vm39, %v37
    %55 = vst.msk [vmem:[#allocation5 + $0x78] sm:$0xff] %vm39, %v38
    // Predicated region
    $region10: #{tpu_custom_call.1} parent=1 // pred_check
      _
    $region11: #{tpu_custom_call.1} parent=1 // pred_check_branch
      %57 = sbr.rel (0) target = $region13
    $region12: #{tpu_custom_call.1} parent=1 // pred_region
      %s59 = ssub.s32 2048, 2048
      %60 = vsyncadd [#allocation4], %s59
      %s61 = sshll.u32 [#allocation5], 4
      %s62 = int_to_ptr.vmem [resolvable:$true] %s61
      %67 = dma.vmem_to_hbm [thread:$0]  %s62, 2048, %s1, [#allocation4], 128, 128, 8
    $region13: #{tpu_custom_call.1} parent=1 // pred_fallthru
      _
    // Predicated region
    $region14: #{tpu_custom_call.1} parent=1 // pred_check
      _
    $region15: #{tpu_custom_call.1} parent=1 // pred_check_branch
      %69 = sbr.rel (0) target = $region17
    $region16: #{tpu_custom_call.1} parent=1 // pred_region
      %70 = dma.done [#allocation4], 2048
    $region17: #{tpu_custom_call.1} parent=1 // pred_fallthru
      _
    %71 = vsyncpa [#allocation3], 1
    %72 = vsyncpa [#allocation4], 1

</llo_original>
